<compile_context>
chip_gen: v7x
topology: tpu7x:2x2x1
jax: 0.10.0
libtpu: 0.0.40
codegen_flags: <defaults>
</compile_context>

<pallas_src>
import functools
import math

import jax
import jax.numpy as jnp
from jax.experimental import pallas as pl
from jax.experimental.pallas import tpu as pltpu

_LANE = 128
_MAX_TILE_N = 512


def _round_up(x, m):
    return ((x + m - 1) // m) * m


def _rotate_matmul_kernel(flat_src_ref, img_ref, out_ref):
    """One output-pixel tile.

    flat_src_ref: (1, TILE_N) int32  -- flat source index per output pixel,
                  -1 marks out-of-bounds (zero fill / padding columns).
    img_ref:      (M, HW)            -- all batches*channels on rows (resident
                                        across the grid: index_map is constant).
    out_ref:      (M, TILE_N)
    """
    hw_src = img_ref.shape[1]
    tile_n = out_ref.shape[1]

    src = flat_src_ref[...]                                        # (1, TILE_N)
    k = jax.lax.broadcasted_iota(jnp.int32, (hw_src, tile_n), 0)   # source idx
    # -1 sentinel matches no source row -> all-zero column -> zero padding.
    onehot = (k == src).astype(img_ref.dtype)                      # (HW, TILE_N)

    out = jnp.dot(img_ref[...], onehot, preferred_element_type=jnp.float32)
    out_ref[...] = out.astype(out_ref.dtype)


def _compute_flat_src(angle_deg, H, W, hw_pad):
    """Nearest-neighbor inverse-rotation index map, shape (1, hw_pad) int32."""
    rad = angle_deg.astype(jnp.float32) * jnp.float32(math.pi / 180.0)
    cos_a = jnp.cos(rad)
    sin_a = jnp.sin(rad)

    # 2-D pixel-center coordinates (no div/mod needed).
    oi = jnp.arange(H, dtype=jnp.float32)[:, None]   # output row    (H, 1)
    oj = jnp.arange(W, dtype=jnp.float32)[None, :]   # output col    (1, W)
    x_out = oj - (W * 0.5) + 0.5
    y_out = oi - (H * 0.5) + 0.5
    # torchvision F.rotate inverse affine about the image center (angle CCW).
    ix = cos_a * x_out - sin_a * y_out + (W * 0.5 - 0.5)
    iy = sin_a * x_out + cos_a * y_out + (H * 0.5 - 0.5)

    jx = jnp.round(ix).astype(jnp.int32)
    jy = jnp.round(iy).astype(jnp.int32)
    valid = (jx >= 0) & (jx < W) & (jy >= 0) & (jy < H)
    flat = jnp.where(valid, jy * W + jx, -1).reshape(1, H * W)
    if hw_pad > H * W:
        flat = jnp.pad(flat, ((0, 0), (0, hw_pad - H * W)), constant_values=-1)
    return flat


def _rotate_pair_impl(image, mask, angle_deg):
    B, C, H, W = image.shape
    Bm, Cm, Hm, Wm = mask.shape
    assert (Bm, Hm, Wm) == (B, H, W), "image/mask batch+spatial dims must match"

    HW = H * W
    M = B * (C + Cm)
    dtype = image.dtype

    # Fuse image + mask into the matmul M dimension.
    x = jnp.concatenate([image, mask.astype(dtype)], axis=1).reshape(M, HW)

    # Lane-dense output tiling.
    tile_n = min(_MAX_TILE_N, _round_up(HW, _LANE))
    hw_pad = _round_up(HW, tile_n)
    grid = (hw_pad // tile_n,)

    flat_src = _compute_flat_src(angle_deg, H, W, hw_pad)

    # VMEM budget (v7x only has 64 MiB): onehot slab + resident source rows +
    # double-buffered out/flat_src tiles, with 2x headroom.
    itemsize = jnp.dtype(dtype).itemsize
    vmem_est = (HW * tile_n * itemsize        # one-hot slab
                + 2 * M * HW * itemsize       # resident source slab
                + 4 * M * tile_n * 4          # f32 acc + out double-buffer
                + 4 * tile_n * 4)             # flat_src tiles
    vmem_limit = int(min(max(2 * vmem_est, 8 << 20), 60 << 20))

    out = pl.pallas_call(
        _rotate_matmul_kernel,
        out_shape=jax.ShapeDtypeStruct((M, hw_pad), dtype),
        grid=grid,
        in_specs=[
            pl.BlockSpec((1, tile_n), lambda n: (0, n)),   # flat_src tile
            pl.BlockSpec((M, HW), lambda n: (0, 0)),       # resident source slab
        ],
        out_specs=pl.BlockSpec((M, tile_n), lambda n: (0, n)),
        compiler_params=pltpu.CompilerParams(
            dimension_semantics=("parallel",),
            vmem_limit_bytes=vmem_limit,
        ),
    )(flat_src, x)

    out = out[:, :HW].reshape(B, C + Cm, H, W)
    img_rot = out[:, :C]
    mask_rot = out[:, C:].astype(mask.dtype)
    return img_rot, mask_rot


_rotate_pair_jit = jax.jit(_rotate_pair_impl)


def rotate_pair(image, mask, angle):
    """Rotate image+mask by `angle` degrees (CCW), nearest neighbor, zero fill."""
    angle_deg = jnp.asarray(angle, dtype=jnp.float32)
    return _rotate_pair_jit(image, mask, angle_deg)


class Rotate:
    """Pallas/JAX port of watermark_anything Rotate module."""

    def __init__(self, min_angle=None, max_angle=None):
        self.min_angle = min_angle
        self.max_angle = max_angle

    def get_random_angle(self, key):
        if self.min_angle is None or self.max_angle is None:
            raise ValueError("min_angle and max_angle must be provided")
        # Stays on device: no host sync, no per-angle retrace of the kernel.
        return jax.random.randint(key, (), self.min_angle, self.max_angle + 1)

    def __call__(self, image, mask, angle=None, key=None):
        if angle is None:
            angle = self.get_random_angle(key)
        return rotate_pair(image, mask, angle)


if __name__ == "__main__":
    key = jax.random.PRNGKey(0)
    k_img, k_mask, k_ang = jax.random.split(key, 3)

    B, C, H, W = 2, 3, 16, 16
    image = jax.random.uniform(k_img, (B, C, H, W), dtype=jnp.float32)
    mask = (jax.random.uniform(k_mask, (B, 1, H, W)) > 0.5).astype(jnp.float32)

    rot = Rotate(min_angle=-30, max_angle=30)

    # sanity: angle=0 is identity
    img0, msk0 = rot(image, mask, angle=0)
    jax.block_until_ready((img0, msk0))
    assert jnp.allclose(img0, image) and jnp.allclose(msk0, mask)

    # sanity: angle=90 (CCW) matches rot90 over (H, W) for both tensors
    img90, msk90 = rot(image, mask, angle=90)
    jax.block_until_ready((img90, msk90))
    assert jnp.allclose(img90, jnp.rot90(image, k=1, axes=(2, 3)))
    assert jnp.allclose(msk90, jnp.rot90(mask, k=1, axes=(2, 3)))

    # main run: deterministic random angle from the module's range
    img_r, msk_r = rot(image, mask, angle=None, key=k_ang)
    jax.block_until_ready((img_r, msk_r))
    assert img_r.shape == image.shape and msk_r.shape == mask.shape

    print("KERNEL_OK")
</pallas_src>

<mosaic_0001>
module attributes {stable_mosaic.version = 11 : i64} {
  func.func @_rotate_matmul_kernel(%arg0: i32, %arg1: memref<1x256xi32, #tpu.memory_space<vmem>>, %arg2: memref<8x256xf32, #tpu.memory_space<vmem>>, %arg3: memref<8x256xf32, #tpu.memory_space<vmem>>) attributes {dimension_semantics = [#tpu.dimension_semantics<parallel>], iteration_bounds = array<i64: 1>, scalar_prefetch = 0 : i64, scratch_operands = 0 : i64, tpu.core_type = #tpu.core_type<tc>, window_params = [{transform_indices = @transform_0, window_bounds = array<i64: 1, 256>}, {pipeline_mode = #tpu.pipeline_mode<synchronous>, transform_indices = @transform_1, window_bounds = array<i64: 8, 256>}, {transform_indices = @transform_2, window_bounds = array<i64: 8, 256>}]} {
    %c0 = arith.constant 0 : index
    %c0_0 = arith.constant 0 : index
    %0 = vector.load %arg1[%c0, %c0_0] : memref<1x256xi32, #tpu.memory_space<vmem>>, vector<1x256xi32>
    %1 = tpu.iota {dimensions = array<i32: 0>} : vector<256x256xi32>
    %2 = vector.broadcast %0 : vector<1x256xi32> to vector<256x256xi32>
    %3 = arith.cmpi eq, %1, %2 : vector<256x256xi32>
    %4 = arith.extui %3 : vector<256x256xi1> to vector<256x256xi32>
    %5 = arith.sitofp %4 : vector<256x256xi32> to vector<256x256xf32>
    %c0_1 = arith.constant 0 : index
    %c0_2 = arith.constant 0 : index
    %6 = vector.load %arg2[%c0_1, %c0_2] : memref<8x256xf32, #tpu.memory_space<vmem>>, vector<8x256xf32>
    %cst = arith.constant dense<0.000000e+00> : vector<8x256xf32>
    %7 = tpu.matmul %6, %5, %cst {dimension_numbers = #tpu.dot_dimension_numbers<[1], [0], [0], [1], [0, 0, 1, 1], [], []>} : vector<8x256xf32>, vector<256x256xf32>, vector<8x256xf32> -> vector<8x256xf32>
    %c0_3 = arith.constant 0 : index
    %c0_4 = arith.constant 0 : index
    %8 = vector.load %arg3[%c0_3, %c0_4] : memref<8x256xf32, #tpu.memory_space<vmem>>, vector<8x256xf32>
    tpu.vector_store %arg3[%c0_3, %c0_4], %7 {strides = array<i32>} : memref<8x256xf32, #tpu.memory_space<vmem>>, vector<8x256xf32>,
    return
  }
  func.func @transform_0(%arg0: i32) -> (i32, i32) {
    %c0_i32 = arith.constant 0 : i32
    %c0_i32_0 = arith.constant 0 : i32
    return %c0_i32, %arg0 : i32, i32
  }
  func.func @transform_1(%arg0: i32) -> (i32, i32) {
    %c0_i32 = arith.constant 0 : i32
    %c0_i32_0 = arith.constant 0 : i32
    %c0_i32_1 = arith.constant 0 : i32
    return %c0_i32, %c0_i32_0 : i32, i32
  }
  func.func @transform_2(%arg0: i32) -> (i32, i32) {
    %c0_i32 = arith.constant 0 : i32
    %c0_i32_0 = arith.constant 0 : i32
    return %c0_i32, %arg0 : i32, i32
  }
}

</mosaic_0001>

<llo_original>
// kernel: _rotate_pair_impl.1
$region0: #{_rotate_pair_impl.1}
  #allocation0 [shape = 'u32[]', space=smem, size = 0x4, offset = 0x4, fixed_abs, tag = 'smem constant byte address 0x4 - core index']
  #allocation1 [shape = 'u32[144,128]{1,0:T(1,128)}', space=vmem, size = 0x12000, scoped, tag = 'internal scratch']
  %s0 = inlined_call_operand.vmem [shape: s32[1,256], index: 0, kind: input, shape index: {}]
  %s1 = inlined_call_operand.vmem [shape: f32[8,256], index: 1, kind: input, shape index: {}]
  %s2 = inlined_call_operand.vmem [shape: f32[8,256], index: 2, kind: output, shape index: {}]
  %s3 = sld [smem:[#allocation0]]
  $region18: #{_rotate_pair_impl.1} parent=0
    _
  %s5 = ssub.s32 1, %s3
  %s6 = scalar_select 0, %s5, %s3
  // Predicated region
  $region2: #{_rotate_pair_impl.1} parent=0 // pred_check
    _
  $region3: #{_rotate_pair_impl.1} parent=0 // pred_check_branch
    %8 = sbr.rel (0) target = $region5
  $region4: #{_rotate_pair_impl.1} parent=0 // pred_region
    _
  $region5: #{_rotate_pair_impl.1} parent=0 // pred_fallthru
    _
  // Predicated region
  $region6: #{_rotate_pair_impl.1} parent=0 // pred_check
    _
  $region7: #{_rotate_pair_impl.1} parent=0 // pred_check_branch
    %10 = sbr.rel (0) target = $region9
  $region8: #{_rotate_pair_impl.1} parent=0 // pred_region
    _
  $region9: #{_rotate_pair_impl.1} parent=0 // pred_fallthru
    _
  %v11 = vld [vmem:[%s0] sm:$0x3]
  %v12 = vlaneseq
  %v13 = vshrl.u32 %v12, 7
  %v14 = vadd.s32 %v13, 8
  %v15 = vadd.s32 %v13, 16
  %v16 = vadd.s32 %v13, 24
  %v17 = vadd.s32 %v13, 32
  %v18 = vadd.s32 %v13, 40
  %v19 = vadd.s32 %v13, 48
  %v20 = vadd.s32 %v13, 56
  %v21 = vadd.s32 %v13, 64
  %v22 = vadd.s32 %v13, 72
  %v23 = vadd.s32 %v13, 80
  %v24 = vadd.s32 %v13, 88
  %v25 = vadd.s32 %v13, 96
  %v26 = vadd.s32 %v13, 104
  %v27 = vadd.s32 %v13, 112
  %v28 = vadd.s32 %v13, 120
  %v29 = vadd.s32 %v13, 128
  %v30 = vadd.s32 %v13, 136
  %v31 = vadd.s32 %v13, 144
  %v32 = vadd.s32 %v13, 152
  %v33 = vadd.s32 %v13, 160
  %v34 = vadd.s32 %v13, 168
  %v35 = vadd.s32 %v13, 176
  %v36 = vadd.s32 %v13, 184
  %v37 = vadd.s32 %v13, 192
  %v38 = vadd.s32 %v13, 200
  %v39 = vadd.s32 %v13, 208
  %v40 = vadd.s32 %v13, 216
  %v41 = vadd.s32 %v13, 224
  %v42 = vadd.s32 %v13, 232
  %v43 = vadd.s32 %v13, 240
  %v44 = vadd.s32 %v13, 248
  %v45 = vlaneseq
  %v46 = vshrl.u32 %v45, 7
  %v47 = vsub.s32 0, %v46
  %v48 = vrot.slane %v11, %v47
  %v49 = vlaneseq
  %v50 = vshrl.u32 %v49, 7
  %v51 = vsub.s32 1, %v50
  %v52 = vrot.slane %v11, %v51
  %vm53 = vcmp.eq.s32.totalorder %v13, %v48
  %vm54 = vcmp.eq.s32.totalorder %v13, %v52
  %vm55 = vcmp.eq.s32.totalorder %v14, %v48
  %vm56 = vcmp.eq.s32.totalorder %v14, %v52
  %vm57 = vcmp.eq.s32.totalorder %v15, %v48
  %vm58 = vcmp.eq.s32.totalorder %v15, %v52
  %vm59 = vcmp.eq.s32.totalorder %v16, %v48
  %vm60 = vcmp.eq.s32.totalorder %v16, %v52
  %vm61 = vcmp.eq.s32.totalorder %v17, %v48
  %vm62 = vcmp.eq.s32.totalorder %v17, %v52
  %vm63 = vcmp.eq.s32.totalorder %v18, %v48
  %vm64 = vcmp.eq.s32.totalorder %v18, %v52
  %vm65 = vcmp.eq.s32.totalorder %v19, %v48
  %vm66 = vcmp.eq.s32.totalorder %v19, %v52
  %vm67 = vcmp.eq.s32.totalorder %v20, %v48
  %vm68 = vcmp.eq.s32.totalorder %v20, %v52
  %vm69 = vcmp.eq.s32.totalorder %v21, %v48
  %vm70 = vcmp.eq.s32.totalorder %v21, %v52
  %vm71 = vcmp.eq.s32.totalorder %v22, %v48
  %vm72 = vcmp.eq.s32.totalorder %v22, %v52
  %vm73 = vcmp.eq.s32.totalorder %v23, %v48
  %vm74 = vcmp.eq.s32.totalorder %v23, %v52
  %vm75 = vcmp.eq.s32.totalorder %v24, %v48
  %vm76 = vcmp.eq.s32.totalorder %v24, %v52
  %vm77 = vcmp.eq.s32.totalorder %v25, %v48
  %vm78 = vcmp.eq.s32.totalorder %v25, %v52
  %vm79 = vcmp.eq.s32.totalorder %v26, %v48
  %vm80 = vcmp.eq.s32.totalorder %v26, %v52
  %vm81 = vcmp.eq.s32.totalorder %v27, %v48
  %vm82 = vcmp.eq.s32.totalorder %v27, %v52
  %vm83 = vcmp.eq.s32.totalorder %v28, %v48
  %vm84 = vcmp.eq.s32.totalorder %v28, %v52
  %vm85 = vcmp.eq.s32.totalorder %v29, %v48
  %vm86 = vcmp.eq.s32.totalorder %v29, %v52
  %vm87 = vcmp.eq.s32.totalorder %v30, %v48
  %vm88 = vcmp.eq.s32.totalorder %v30, %v52
  %vm89 = vcmp.eq.s32.totalorder %v31, %v48
  %vm90 = vcmp.eq.s32.totalorder %v31, %v52
  %vm91 = vcmp.eq.s32.totalorder %v32, %v48
  %vm92 = vcmp.eq.s32.totalorder %v32, %v52
  %vm93 = vcmp.eq.s32.totalorder %v33, %v48
  %vm94 = vcmp.eq.s32.totalorder %v33, %v52
  %vm95 = vcmp.eq.s32.totalorder %v34, %v48
  %vm96 = vcmp.eq.s32.totalorder %v34, %v52
  %vm97 = vcmp.eq.s32.totalorder %v35, %v48
  %vm98 = vcmp.eq.s32.totalorder %v35, %v52
  %vm99 = vcmp.eq.s32.totalorder %v36, %v48
  %vm100 = vcmp.eq.s32.totalorder %v36, %v52
  %vm101 = vcmp.eq.s32.totalorder %v37, %v48
  %vm102 = vcmp.eq.s32.totalorder %v37, %v52
  %vm103 = vcmp.eq.s32.totalorder %v38, %v48
  %vm104 = vcmp.eq.s32.totalorder %v38, %v52
  %vm105 = vcmp.eq.s32.totalorder %v39, %v48
  %vm106 = vcmp.eq.s32.totalorder %v39, %v52
  %vm107 = vcmp.eq.s32.totalorder %v40, %v48
  %vm108 = vcmp.eq.s32.totalorder %v40, %v52
  %vm109 = vcmp.eq.s32.totalorder %v41, %v48
  %vm110 = vcmp.eq.s32.totalorder %v41, %v52
  %vm111 = vcmp.eq.s32.totalorder %v42, %v48
  %vm112 = vcmp.eq.s32.totalorder %v42, %v52
  %vm113 = vcmp.eq.s32.totalorder %v43, %v48
  %vm114 = vcmp.eq.s32.totalorder %v43, %v52
  %vm115 = vcmp.eq.s32.totalorder %v44, %v48
  %vm116 = vcmp.eq.s32.totalorder %v44, %v52
  %v117 = vsel %vm53, 1, 0
  %v118 = vsel %vm54, 1, 0
  %v119 = vsel %vm55, 1, 0
  %v120 = vsel %vm56, 1, 0
  %v121 = vsel %vm57, 1, 0
  %v122 = vsel %vm58, 1, 0
  %v123 = vsel %vm59, 1, 0
  %v124 = vsel %vm60, 1, 0
  %v125 = vsel %vm61, 1, 0
  %v126 = vsel %vm62, 1, 0
  %v127 = vsel %vm63, 1, 0
  %v128 = vsel %vm64, 1, 0
  %v129 = vsel %vm65, 1, 0
  %v130 = vsel %vm66, 1, 0
  %v131 = vsel %vm67, 1, 0
  %v132 = vsel %vm68, 1, 0
  %v133 = vsel %vm69, 1, 0
  %v134 = vsel %vm70, 1, 0
  %v135 = vsel %vm71, 1, 0
  %v136 = vsel %vm72, 1, 0
  %v137 = vsel %vm73, 1, 0
  %v138 = vsel %vm74, 1, 0
  %v139 = vsel %vm75, 1, 0
  %v140 = vsel %vm76, 1, 0
  %v141 = vsel %vm77, 1, 0
  %v142 = vsel %vm78, 1, 0
  %v143 = vsel %vm79, 1, 0
  %v144 = vsel %vm80, 1, 0
  %v145 = vsel %vm81, 1, 0
  %v146 = vsel %vm82, 1, 0
  %v147 = vsel %vm83, 1, 0
  %v148 = vsel %vm84, 1, 0
  %v149 = vsel %vm85, 1, 0
  %v150 = vsel %vm86, 1, 0
  %v151 = vsel %vm87, 1, 0
  %v152 = vsel %vm88, 1, 0
  %v153 = vsel %vm89, 1, 0
  %v154 = vsel %vm90, 1, 0
  %v155 = vsel %vm91, 1, 0
  %v156 = vsel %vm92, 1, 0
  %v157 = vsel %vm93, 1, 0
  %v158 = vsel %vm94, 1, 0
  %v159 = vsel %vm95, 1, 0
  %v160 = vsel %vm96, 1, 0
  %v161 = vsel %vm97, 1, 0
  %v162 = vsel %vm98, 1, 0
  %v163 = vsel %vm99, 1, 0
  %v164 = vsel %vm100, 1, 0
  %v165 = vsel %vm101, 1, 0
  %v166 = vsel %vm102, 1, 0
  %v167 = vsel %vm103, 1, 0
  %v168 = vsel %vm104, 1, 0
  %v169 = vsel %vm105, 1, 0
  %v170 = vsel %vm106, 1, 0
  %v171 = vsel %vm107, 1, 0
  %v172 = vsel %vm108, 1, 0
  %v173 = vsel %vm109, 1, 0
  %v174 = vsel %vm110, 1, 0
  %v175 = vsel %vm111, 1, 0
  %v176 = vsel %vm112, 1, 0
  %v177 = vsel %vm113, 1, 0
  %v178 = vsel %vm114, 1, 0
  %v179 = vsel %vm115, 1, 0
  %v180 = vsel %vm116, 1, 0
  %v181 = vcvt.s32.f32 %v117
  %v182 = vcvt.s32.f32 %v118
  %v183 = vcvt.s32.f32 %v119
  %v184 = vcvt.s32.f32 %v120
  %v185 = vcvt.s32.f32 %v121
  %v186 = vcvt.s32.f32 %v122
  %v187 = vcvt.s32.f32 %v123
  %v188 = vcvt.s32.f32 %v124
  %v189 = vcvt.s32.f32 %v125
  %v190 = vcvt.s32.f32 %v126
  %v191 = vcvt.s32.f32 %v127
  %v192 = vcvt.s32.f32 %v128
  %v193 = vcvt.s32.f32 %v129
  %v194 = vcvt.s32.f32 %v130
  %v195 = vcvt.s32.f32 %v131
  %v196 = vcvt.s32.f32 %v132
  %v197 = vcvt.s32.f32 %v133
  %v198 = vcvt.s32.f32 %v134
  %v199 = vcvt.s32.f32 %v135
  %v200 = vcvt.s32.f32 %v136
  %v201 = vcvt.s32.f32 %v137
  %v202 = vcvt.s32.f32 %v138
  %v203 = vcvt.s32.f32 %v139
  %v204 = vcvt.s32.f32 %v140
  %v205 = vcvt.s32.f32 %v141
  %v206 = vcvt.s32.f32 %v142
  %v207 = vcvt.s32.f32 %v143
  %v208 = vcvt.s32.f32 %v144
  %v209 = vcvt.s32.f32 %v145
  %v210 = vcvt.s32.f32 %v146
  %v211 = vcvt.s32.f32 %v147
  %v212 = vcvt.s32.f32 %v148
  %v213 = vcvt.s32.f32 %v149
  %v214 = vcvt.s32.f32 %v150
  %v215 = vcvt.s32.f32 %v151
  %v216 = vcvt.s32.f32 %v152
  %v217 = vcvt.s32.f32 %v153
  %v218 = vcvt.s32.f32 %v154
  %v219 = vcvt.s32.f32 %v155
  %v220 = vcvt.s32.f32 %v156
  %v221 = vcvt.s32.f32 %v157
  %v222 = vcvt.s32.f32 %v158
  %v223 = vcvt.s32.f32 %v159
  %v224 = vcvt.s32.f32 %v160
  %v225 = vcvt.s32.f32 %v161
  %v226 = vcvt.s32.f32 %v162
  %v227 = vcvt.s32.f32 %v163
  %v228 = vcvt.s32.f32 %v164
  %v229 = vcvt.s32.f32 %v165
  %v230 = vcvt.s32.f32 %v166
  %v231 = vcvt.s32.f32 %v167
  %v232 = vcvt.s32.f32 %v168
  %v233 = vcvt.s32.f32 %v169
  %v234 = vcvt.s32.f32 %v170
  %v235 = vcvt.s32.f32 %v171
  %v236 = vcvt.s32.f32 %v172
  %v237 = vcvt.s32.f32 %v173
  %v238 = vcvt.s32.f32 %v174
  %v239 = vcvt.s32.f32 %v175
  %v240 = vcvt.s32.f32 %v176
  %v241 = vcvt.s32.f32 %v177
  %v242 = vcvt.s32.f32 %v178
  %v243 = vcvt.s32.f32 %v179
  %v244 = vcvt.s32.f32 %v180
  %v245 = vld [vmem:[%s1] sm:$0xff]
  %v246 = vld [vmem:[%s1 + $0x8] sm:$0xff]
  %247 = vmatprep.subr.mxu0 %v182
  %248 = vmatpush1.msra.mxu0 %v181
  %249 = vmatprep.subr.mxu0 %v184
  %250 = vmatpush1.msra.mxu0 %v183
  %251 = vmatprep.subr.mxu0 %v186
  %252 = vmatpush1.msra.mxu0 %v185
  %253 = vmatprep.subr.mxu0 %v188
  %254 = vmatpush1.msra.mxu0 %v187
  %255 = vmatprep.subr.mxu0 %v190
  %256 = vmatpush1.msra.mxu0 %v189
  %257 = vmatprep.subr.mxu0 %v192
  %258 = vmatpush1.msra.mxu0 %v191
  %259 = vmatprep.subr.mxu0 %v194
  %260 = vmatpush1.msra.mxu0 %v193
  %261 = vmatprep.subr.mxu0 %v196
  %262 = vmatpush1.msra.mxu0 %v195
  %263 = vmatprep.subr.mxu0 %v198
  %264 = vmatpush1.msra.mxu0 %v197
  %265 = vmatprep.subr.mxu0 %v200
  %266 = vmatpush1.msra.mxu0 %v199
  %267 = vmatprep.subr.mxu0 %v202
  %268 = vmatpush1.msra.mxu0 %v201
  %269 = vmatprep.subr.mxu0 %v204
  %270 = vmatpush1.msra.mxu0 %v203
  %271 = vmatprep.subr.mxu0 %v206
  %272 = vmatpush1.msra.mxu0 %v205
  %273 = vmatprep.subr.mxu0 %v208
  %274 = vmatpush1.msra.mxu0 %v207
  %275 = vmatprep.subr.mxu0 %v210
  %276 = vmatpush1.msra.mxu0 %v209
  %277 = vmatprep.subr.mxu0 %v212
  %278 = vmatpush1.msra.mxu0 %v211
  %279 = vmatprep.subr.mxu0 %v214
  %280 = vmatpush1.msra.mxu0 %v213
  %281 = vmatprep.subr.mxu0 %v216
  %282 = vmatpush1.msra.mxu0 %v215
  %283 = vmatprep.subr.mxu0 %v218
  %284 = vmatpush1.msra.mxu0 %v217
  %285 = vmatprep.subr.mxu0 %v220
  %286 = vmatpush1.msra.mxu0 %v219
  %287 = vmatprep.subr.mxu0 %v222
  %288 = vmatpush1.msra.mxu0 %v221
  %289 = vmatprep.subr.mxu0 %v224
  %290 = vmatpush1.msra.mxu0 %v223
  %291 = vmatprep.subr.mxu0 %v226
  %292 = vmatpush1.msra.mxu0 %v225
  %293 = vmatprep.subr.mxu0 %v228
  %294 = vmatpush1.msra.mxu0 %v227
  %295 = vmatprep.subr.mxu0 %v230
  %296 = vmatpush1.msra.mxu0 %v229
  %297 = vmatprep.subr.mxu0 %v232
  %298 = vmatpush1.msra.mxu0 %v231
  %299 = vmatprep.subr.mxu0 %v234
  %300 = vmatpush1.msra.mxu0 %v233
  %301 = vmatprep.subr.mxu0 %v236
  %302 = vmatpush1.msra.mxu0 %v235
  %303 = vmatprep.subr.mxu0 %v238
  %304 = vmatpush1.msra.mxu0 %v237
  %305 = vmatprep.subr.mxu0 %v240
  %306 = vmatpush1.msra.mxu0 %v239
  %307 = vmatprep.subr.mxu0 %v242
  %308 = vmatpush1.msra.mxu0 %v241
  %309 = vmatprep.subr.mxu0 %v244
  %310 = vmatpush1.msra.mxu0 %v243
  %311 = vmatprep.mubr.f32.mxu0 %v246
  %312 = vmatmul.mubr.f32.gmra.mrb[0].mxu0 %v245
  %v313 = vpop.f32.mrb[0].mxu0
  %v314 = vadd.f32 0.0, %v313
  %v315 = vpop.f32.mrb[0].mxu0
  %v316 = vadd.f32 0.0, %v315
  %317 = vdwg.mxu0
  %318 = vst [vmem:[%s2] sm:$0xff] %v314
  %319 = vst [vmem:[%s2 + $0x8] sm:$0xff] %v316
  // Predicated region
  $region10: #{_rotate_pair_impl.1} parent=0 // pred_check
    _
  $region11: #{_rotate_pair_impl.1} parent=0 // pred_check_branch
    %321 = sbr.rel (0) target = $region13
  $region12: #{_rotate_pair_impl.1} parent=0 // pred_region
    _
  $region13: #{_rotate_pair_impl.1} parent=0 // pred_fallthru
    _
  // Predicated region
  $region14: #{_rotate_pair_impl.1} parent=0 // pred_check
    _
  $region15: #{_rotate_pair_impl.1} parent=0 // pred_check_branch
    %323 = sbr.rel (0) target = $region17
  $region16: #{_rotate_pair_impl.1} parent=0 // pred_region
    _
  $region17: #{_rotate_pair_impl.1} parent=0 // pred_fallthru
    _

</llo_original>
